<compile_context>
chip_gen: v7x
topology: tpu7x:2x2x1
jax: 0.10.0
libtpu: 0.0.40
codegen_flags: <defaults>
</compile_context>

<pallas_src>
import functools

import jax
import jax.numpy as jnp
from jax.experimental import pallas as pl
from jax.experimental.pallas import tpu as pltpu


def qnetwork_kernel(x_ref,
                    w1_ref, b1_ref, w2_ref, b2_ref, w3_ref, b3_ref,
                    w4_ref, b4_ref, w5_ref, b5_ref,
                    o_ref, *, sub):
    """One batch tile.  x_ref: [tile, S] f32 ; o_ref: [A_pad, tile] f32."""
    tile = x_ref.shape[0]
    n_sub = tile // sub

    # Tiny constant weights/biases: load once per grid step (hoisted out of the
    # column loop so nothing is re-broadcast per iteration).
    w1, b1 = w1_ref[...], b1_ref[...]
    w2, b2 = w2_ref[...], b2_ref[...]
    w3, b3 = w3_ref[...], b3_ref[...]
    w4, b4 = w4_ref[...], b4_ref[...]
    w5, b5 = w5_ref[...], b5_ref[...]

    def dense(w, b, h, relu):
        # bf16 MXU matmul with f32 accumulate; bias + ReLU in f32 on the VPU.
        acc = jnp.dot(w, h, preferred_element_type=jnp.float32)
        acc = acc + b                        # [out, 1] broadcast over lanes
        if relu:
            acc = jnp.maximum(acc, 0.0)
        return acc

    # Fully-unrolled column sub-loop: the whole layer chain for one `sub`-wide
    # slab stays in vregs (no [64, tile] VMEM round-trips).  All slices are
    # static and lane-aligned (sub % 128 == 0), so loads/stores are unmasked.
    for j in range(n_sub):
        cols = pl.ds(j * sub, sub)
        xs = x_ref[cols, :].astype(jnp.bfloat16)            # [sub, S] bf16
        # fc1: contract both last dims (== w1 @ xs^T) -> [64, sub], batch on lanes.
        h = jax.lax.dot_general(w1, xs, (((1,), (1,)), ((), ())),
                                preferred_element_type=jnp.float32)
        h = jnp.maximum(h + b1, 0.0).astype(jnp.bfloat16)   # [64, sub]
        h = dense(w2, b2, h, True).astype(jnp.bfloat16)     # [32, sub]
        h = dense(w3, b3, h, True).astype(jnp.bfloat16)     # [16, sub]
        h = dense(w4, b4, h, True).astype(jnp.bfloat16)     # [ 8, sub]
        out = dense(w5, b5, h, False)                       # [A_pad, sub] f32
        o_ref[:, cols] = out                                # lane-dense store


def _round_up(n, m):
    return ((n + m - 1) // m) * m


def _choose_tiles(batch, batch_tile, sub_tile):
    """Pick (batch tile, inner column sub-tile); both multiples of 128."""
    batch_tile = min(batch_tile, 16384)        # v7x: keep well under 64 MiB VMEM
    b128 = _round_up(batch, 128)
    tile = min(_round_up(batch_tile, 128), b128)
    # >= 2 grid steps whenever the batch allows it, so v7x's two TensorCores
    # (and the input/output DMA pipeline) both get work.
    grid = max(pl.cdiv(b128, tile), 2 if b128 >= 256 else 1)
    q = pl.cdiv(b128, grid)
    sub = min(_round_up(sub_tile, 128), _round_up(q, 128))
    tile = _round_up(q, sub)                   # tile % sub == 0 by construction
    return tile, sub


def qnetwork_forward(x, params, *, batch_tile=8192, sub_tile=512):
    """Forward pass.

    x:      [B, state_size] float32 (native PyTorch layout; no host transpose)
    params: w1..w5 as [out, in] bfloat16, b1..b5 as [out, 1] float32
    returns [B, action_size] float32
    """
    B, S = x.shape
    A = params["w5"].shape[0]
    A_pad = _round_up(A, 8)          # full-sublane output rows -> unmasked stores

    tile, sub = _choose_tiles(B, batch_tile, sub_tile)
    B_pad = _round_up(B, tile)
    if B_pad != B:
        x = jnp.pad(x, ((0, B_pad - B), (0, 0)))

    w5, b5 = params["w5"], params["b5"]
    if A_pad != A:                   # tiny pads: [A,8]->[A_pad,8], [A,1]->[A_pad,1]
        w5 = jnp.pad(w5, ((0, A_pad - A), (0, 0)))
        b5 = jnp.pad(b5, ((0, A_pad - A), (0, 0)))

    weights = [(params["w1"], params["b1"]), (params["w2"], params["b2"]),
               (params["w3"], params["b3"]), (params["w4"], params["b4"]),
               (w5, b5)]

    # Constant-index blocks for the few-KB weights/biases (they could also be
    # single-buffered; footprint is ~12 KiB, so left at the default).
    def const_spec(shape):
        return pl.BlockSpec(shape, lambda i: (0,) * len(shape))

    in_specs = [pl.BlockSpec((tile, S), lambda i: (i, 0))]
    args = [x]
    for w, b in weights:
        in_specs += [const_spec(w.shape), const_spec(b.shape)]
        args += [w, b]

    # VMEM budget: double-buffered x/out blocks (conservatively assume the
    # narrow [tile, S] x block is lane-padded to 128 in VMEM) + weights +
    # spill headroom.  Capped at 32 MiB so it is safe on v5e/v6e/v7x alike.
    x_blk = tile * max(S, 128) * 4
    o_blk = A_pad * tile * 4
    vmem_limit = int(min(32 << 20, max(16 << 20, 3 * (x_blk + o_blk))))

    out_t = pl.pallas_call(
        functools.partial(qnetwork_kernel, sub=sub),
        out_shape=jax.ShapeDtypeStruct((A_pad, B_pad), jnp.float32),
        grid_spec=pltpu.PrefetchScalarGridSpec(
            num_scalar_prefetch=0,
            grid=(B_pad // tile,),
            in_specs=in_specs,
            out_specs=pl.BlockSpec((A_pad, tile), lambda i: (0, i)),
        ),
        compiler_params=pltpu.CompilerParams(
            dimension_semantics=("parallel",),
            vmem_limit_bytes=vmem_limit,
        ),
    )(*args)

    return out_t[:A, :B].T                     # back to [B, action_size] f32


def init_qnetwork_params(state_size, action_size, seed=0):
    """Deterministic init mimicking nn.Linear's U(-1/sqrt(fan_in), +1/sqrt(fan_in)).

    Weights in PyTorch layout [out, in] as bf16 (MXU inputs); biases [out, 1] f32.
    """
    sizes = [state_size, 64, 32, 16, 8, action_size]
    key = jax.random.PRNGKey(seed)
    params = {}
    for n in range(1, 6):
        fan_in, fan_out = sizes[n - 1], sizes[n]
        key, kw, kb = jax.random.split(key, 3)
        bound = 1.0 / float(fan_in) ** 0.5
        w = jax.random.uniform(kw, (fan_out, fan_in), jnp.float32, -bound, bound)
        b = jax.random.uniform(kb, (fan_out, 1), jnp.float32, -bound, bound)
        params[f"w{n}"] = w.astype(jnp.bfloat16)
        params[f"b{n}"] = b
    return params


def qnetwork_ref(x, params):
    """Plain-JAX reference with the same bf16-matmul / f32-accumulate recipe."""
    h = x.astype(jnp.bfloat16)
    for n in range(1, 5):
        pre = jnp.dot(h, params[f"w{n}"].T, preferred_element_type=jnp.float32)
        pre = pre + params[f"b{n}"].T
        h = jnp.maximum(pre, 0.0).astype(jnp.bfloat16)
    out = jnp.dot(h, params["w5"].T, preferred_element_type=jnp.float32)
    return out + params["b5"].T


if __name__ == "__main__":
    state_size = 8
    action_size = 4

    params = init_qnetwork_params(state_size, action_size, seed=0)

    key = jax.random.PRNGKey(0)
    # batch=64: single grid step; batch=640: exercises grid=2 + batch padding.
    for batch in (64, 640):
        key, xkey = jax.random.split(key)
        x = jax.random.normal(xkey, (batch, state_size), jnp.float32)

        out = jax.block_until_ready(qnetwork_forward(x, params))
        ref = qnetwork_ref(x, params)

        assert out.shape == (batch, action_size)
        assert jnp.allclose(out, ref, atol=2e-3, rtol=2e-3), \
            float(jnp.max(jnp.abs(out - ref)))

    print("KERNEL_OK")
</pallas_src>

<mosaic_0001>
module attributes {stable_mosaic.version = 11 : i64} {
  func.func @qnetwork_kernel(%arg0: i32, %arg1: memref<128x8xf32, #tpu.memory_space<vmem>>, %arg2: memref<64x8xbf16, #tpu.memory_space<vmem>>, %arg3: memref<64x1xf32, #tpu.memory_space<vmem>>, %arg4: memref<32x64xbf16, #tpu.memory_space<vmem>>, %arg5: memref<32x1xf32, #tpu.memory_space<vmem>>, %arg6: memref<16x32xbf16, #tpu.memory_space<vmem>>, %arg7: memref<16x1xf32, #tpu.memory_space<vmem>>, %arg8: memref<8x16xbf16, #tpu.memory_space<vmem>>, %arg9: memref<8x1xf32, #tpu.memory_space<vmem>>, %arg10: memref<8x8xbf16, #tpu.memory_space<vmem>>, %arg11: memref<8x1xf32, #tpu.memory_space<vmem>>, %arg12: memref<8x128xf32, #tpu.memory_space<vmem>>) attributes {dimension_semantics = [#tpu.dimension_semantics<parallel>], iteration_bounds = array<i64: 1>, scalar_prefetch = 0 : i64, scratch_operands = 0 : i64, tpu.core_type = #tpu.core_type<tc>, window_params = [{transform_indices = @transform_0, window_bounds = array<i64: 128, 8>}, {pipeline_mode = #tpu.pipeline_mode<synchronous>, transform_indices = @transform_1, window_bounds = array<i64: 64, 8>}, {pipeline_mode = #tpu.pipeline_mode<synchronous>, transform_indices = @transform_2, window_bounds = array<i64: 64, 1>}, {pipeline_mode = #tpu.pipeline_mode<synchronous>, transform_indices = @transform_3, window_bounds = array<i64: 32, 64>}, {pipeline_mode = #tpu.pipeline_mode<synchronous>, transform_indices = @transform_4, window_bounds = array<i64: 32, 1>}, {pipeline_mode = #tpu.pipeline_mode<synchronous>, transform_indices = @transform_5, window_bounds = array<i64: 16, 32>}, {pipeline_mode = #tpu.pipeline_mode<synchronous>, transform_indices = @transform_6, window_bounds = array<i64: 16, 1>}, {pipeline_mode = #tpu.pipeline_mode<synchronous>, transform_indices = @transform_7, window_bounds = array<i64: 8, 16>}, {pipeline_mode = #tpu.pipeline_mode<synchronous>, transform_indices = @transform_8, window_bounds = array<i64: 8, 1>}, {pipeline_mode = #tpu.pipeline_mode<synchronous>, transform_indices = @transform_9, window_bounds = array<i64: 8, 8>}, {pipeline_mode = #tpu.pipeline_mode<synchronous>, transform_indices = @transform_10, window_bounds = array<i64: 8, 1>}, {transform_indices = @transform_11, window_bounds = array<i64: 8, 128>}]} {
    %c0 = arith.constant 0 : index
    %c0_0 = arith.constant 0 : index
    %0 = vector.load %arg2[%c0, %c0_0] : memref<64x8xbf16, #tpu.memory_space<vmem>>, vector<64x8xbf16>
    %c0_1 = arith.constant 0 : index
    %c0_2 = arith.constant 0 : index
    %1 = vector.load %arg3[%c0_1, %c0_2] : memref<64x1xf32, #tpu.memory_space<vmem>>, vector<64x1xf32>
    %c0_3 = arith.constant 0 : index
    %c0_4 = arith.constant 0 : index
    %2 = vector.load %arg4[%c0_3, %c0_4] : memref<32x64xbf16, #tpu.memory_space<vmem>>, vector<32x64xbf16>
    %c0_5 = arith.constant 0 : index
    %c0_6 = arith.constant 0 : index
    %3 = vector.load %arg5[%c0_5, %c0_6] : memref<32x1xf32, #tpu.memory_space<vmem>>, vector<32x1xf32>
    %c0_7 = arith.constant 0 : index
    %c0_8 = arith.constant 0 : index
    %4 = vector.load %arg6[%c0_7, %c0_8] : memref<16x32xbf16, #tpu.memory_space<vmem>>, vector<16x32xbf16>
    %c0_9 = arith.constant 0 : index
    %c0_10 = arith.constant 0 : index
    %5 = vector.load %arg7[%c0_9, %c0_10] : memref<16x1xf32, #tpu.memory_space<vmem>>, vector<16x1xf32>
    %c0_11 = arith.constant 0 : index
    %c0_12 = arith.constant 0 : index
    %6 = vector.load %arg8[%c0_11, %c0_12] : memref<8x16xbf16, #tpu.memory_space<vmem>>, vector<8x16xbf16>
    %c0_13 = arith.constant 0 : index
    %c0_14 = arith.constant 0 : index
    %7 = vector.load %arg9[%c0_13, %c0_14] : memref<8x1xf32, #tpu.memory_space<vmem>>, vector<8x1xf32>
    %c0_15 = arith.constant 0 : index
    %c0_16 = arith.constant 0 : index
    %8 = vector.load %arg10[%c0_15, %c0_16] : memref<8x8xbf16, #tpu.memory_space<vmem>>, vector<8x8xbf16>
    %c0_17 = arith.constant 0 : index
    %c0_18 = arith.constant 0 : index
    %9 = vector.load %arg11[%c0_17, %c0_18] : memref<8x1xf32, #tpu.memory_space<vmem>>, vector<8x1xf32>
    %c0_19 = arith.constant 0 : index
    %c0_20 = arith.constant 0 : index
    %10 = vector.load %arg1[%c0_19, %c0_20] : memref<128x8xf32, #tpu.memory_space<vmem>>, vector<128x8xf32>
    %11 = arith.truncf %10 : vector<128x8xf32> to vector<128x8xbf16>
    %cst = arith.constant dense<0.000000e+00> : vector<64x128xf32>
    %12 = tpu.matmul %0, %11, %cst {dimension_numbers = #tpu.dot_dimension_numbers<[1], [1], [0], [0], [0, 0, 1, 0], [], []>} : vector<64x8xbf16>, vector<128x8xbf16>, vector<64x128xf32> -> vector<64x128xf32>
    %13 = vector.broadcast %1 : vector<64x1xf32> to vector<64x128xf32>
    %14 = arith.addf %12, %13 : vector<64x128xf32>
    %cst_21 = arith.constant 0.000000e+00 : f32
    %15 = vector.broadcast %cst_21 : f32 to vector<64x128xf32>
    %16 = arith.maximumf %14, %15 : vector<64x128xf32>
    %17 = arith.truncf %16 : vector<64x128xf32> to vector<64x128xbf16>
    %cst_22 = arith.constant dense<0.000000e+00> : vector<32x128xf32>
    %18 = tpu.matmul %2, %17, %cst_22 {dimension_numbers = #tpu.dot_dimension_numbers<[1], [0], [0], [1], [0, 0, 1, 1], [], []>} : vector<32x64xbf16>, vector<64x128xbf16>, vector<32x128xf32> -> vector<32x128xf32>
    %19 = vector.broadcast %3 : vector<32x1xf32> to vector<32x128xf32>
    %20 = arith.addf %18, %19 : vector<32x128xf32>
    %cst_23 = arith.constant 0.000000e+00 : f32
    %21 = vector.broadcast %cst_23 : f32 to vector<32x128xf32>
    %22 = arith.maximumf %20, %21 : vector<32x128xf32>
    %23 = arith.truncf %22 : vector<32x128xf32> to vector<32x128xbf16>
    %cst_24 = arith.constant dense<0.000000e+00> : vector<16x128xf32>
    %24 = tpu.matmul %4, %23, %cst_24 {dimension_numbers = #tpu.dot_dimension_numbers<[1], [0], [0], [1], [0, 0, 1, 1], [], []>} : vector<16x32xbf16>, vector<32x128xbf16>, vector<16x128xf32> -> vector<16x128xf32>
    %25 = vector.broadcast %5 : vector<16x1xf32> to vector<16x128xf32>
    %26 = arith.addf %24, %25 : vector<16x128xf32>
    %cst_25 = arith.constant 0.000000e+00 : f32
    %27 = vector.broadcast %cst_25 : f32 to vector<16x128xf32>
    %28 = arith.maximumf %26, %27 : vector<16x128xf32>
    %29 = arith.truncf %28 : vector<16x128xf32> to vector<16x128xbf16>
    %cst_26 = arith.constant dense<0.000000e+00> : vector<8x128xf32>
    %30 = tpu.matmul %6, %29, %cst_26 {dimension_numbers = #tpu.dot_dimension_numbers<[1], [0], [0], [1], [0, 0, 1, 1], [], []>} : vector<8x16xbf16>, vector<16x128xbf16>, vector<8x128xf32> -> vector<8x128xf32>
    %31 = vector.broadcast %7 : vector<8x1xf32> to vector<8x128xf32>
    %32 = arith.addf %30, %31 : vector<8x128xf32>
    %cst_27 = arith.constant 0.000000e+00 : f32
    %33 = vector.broadcast %cst_27 : f32 to vector<8x128xf32>
    %34 = arith.maximumf %32, %33 : vector<8x128xf32>
    %35 = arith.truncf %34 : vector<8x128xf32> to vector<8x128xbf16>
    %cst_28 = arith.constant dense<0.000000e+00> : vector<8x128xf32>
    %36 = tpu.matmul %8, %35, %cst_28 {dimension_numbers = #tpu.dot_dimension_numbers<[1], [0], [0], [1], [0, 0, 1, 1], [], []>} : vector<8x8xbf16>, vector<8x128xbf16>, vector<8x128xf32> -> vector<8x128xf32>
    %37 = vector.broadcast %9 : vector<8x1xf32> to vector<8x128xf32>
    %38 = arith.addf %36, %37 : vector<8x128xf32>
    %c0_29 = arith.constant 0 : index
    %c0_30 = arith.constant 0 : index
    %39 = vector.load %arg12[%c0_29, %c0_30] : memref<8x128xf32, #tpu.memory_space<vmem>>, vector<8x128xf32>
    tpu.vector_store %arg12[%c0_29, %c0_30], %38 {strides = array<i32>} : memref<8x128xf32, #tpu.memory_space<vmem>>, vector<8x128xf32>,
    return
  }
  func.func @transform_0(%arg0: i32) -> (i32, i32) {
    %c0_i32 = arith.constant 0 : i32
    %c0_i32_0 = arith.constant 0 : i32
    return %arg0, %c0_i32 : i32, i32
  }
  func.func @transform_1(%arg0: i32) -> (i32, i32) {
    %c0_i32 = arith.constant 0 : i32
    %c0_i32_0 = arith.constant 0 : i32
    %c0_i32_1 = arith.constant 0 : i32
    return %c0_i32, %c0_i32_0 : i32, i32
  }
  func.func @transform_2(%arg0: i32) -> (i32, i32) {
    %c0_i32 = arith.constant 0 : i32
    %c0_i32_0 = arith.constant 0 : i32
    %c0_i32_1 = arith.constant 0 : i32
    return %c0_i32, %c0_i32_0 : i32, i32
  }
  func.func @transform_3(%arg0: i32) -> (i32, i32) {
    %c0_i32 = arith.constant 0 : i32
    %c0_i32_0 = arith.constant 0 : i32
    %c0_i32_1 = arith.constant 0 : i32
    return %c0_i32, %c0_i32_0 : i32, i32
  }
  func.func @transform_4(%arg0: i32) -> (i32, i32) {
    %c0_i32 = arith.constant 0 : i32
    %c0_i32_0 = arith.constant 0 : i32
    %c0_i32_1 = arith.constant 0 : i32
    return %c0_i32, %c0_i32_0 : i32, i32
  }
  func.func @transform_5(%arg0: i32) -> (i32, i32) {
    %c0_i32 = arith.constant 0 : i32
    %c0_i32_0 = arith.constant 0 : i32
    %c0_i32_1 = arith.constant 0 : i32
    return %c0_i32, %c0_i32_0 : i32, i32
  }
  func.func @transform_6(%arg0: i32) -> (i32, i32) {
    %c0_i32 = arith.constant 0 : i32
    %c0_i32_0 = arith.constant 0 : i32
    %c0_i32_1 = arith.constant 0 : i32
    return %c0_i32, %c0_i32_0 : i32, i32
  }
  func.func @transform_7(%arg0: i32) -> (i32, i32) {
    %c0_i32 = arith.constant 0 : i32
    %c0_i32_0 = arith.constant 0 : i32
    %c0_i32_1 = arith.constant 0 : i32
    return %c0_i32, %c0_i32_0 : i32, i32
  }
  func.func @transform_8(%arg0: i32) -> (i32, i32) {
    %c0_i32 = arith.constant 0 : i32
    %c0_i32_0 = arith.constant 0 : i32
    %c0_i32_1 = arith.constant 0 : i32
    return %c0_i32, %c0_i32_0 : i32, i32
  }
  func.func @transform_9(%arg0: i32) -> (i32, i32) {
    %c0_i32 = arith.constant 0 : i32
    %c0_i32_0 = arith.constant 0 : i32
    %c0_i32_1 = arith.constant 0 : i32
    return %c0_i32, %c0_i32_0 : i32, i32
  }
  func.func @transform_10(%arg0: i32) -> (i32, i32) {
    %c0_i32 = arith.constant 0 : i32
    %c0_i32_0 = arith.constant 0 : i32
    %c0_i32_1 = arith.constant 0 : i32
    return %c0_i32, %c0_i32_0 : i32, i32
  }
  func.func @transform_11(%arg0: i32) -> (i32, i32) {
    %c0_i32 = arith.constant 0 : i32
    %c0_i32_0 = arith.constant 0 : i32
    return %c0_i32, %arg0 : i32, i32
  }
}

</mosaic_0001>

<llo_original>
// kernel: tpu_custom_call.1
$region0: #{tpu_custom_call.1}
  #allocation0 [shape = 'u32[]', space=smem, size = 0x4, offset = 0x4, fixed_abs, tag = 'smem constant byte address 0x4 - core index']
  #allocation1 [shape = 'u32[144,128]{1,0:T(1,128)}', space=vmem, size = 0x12000, scoped, tag = 'internal scratch']
  %s0 = inlined_call_operand.vmem [shape: f32[128,8], index: 0, kind: input, shape index: {}]
  %s1 = inlined_call_operand.vmem [shape: bf16[64,8], index: 1, kind: input, shape index: {}]
  %s2 = inlined_call_operand.vmem [shape: f32[64,1], index: 2, kind: input, shape index: {}]
  %s3 = inlined_call_operand.vmem [shape: bf16[32,64], index: 3, kind: input, shape index: {}]
  %s4 = inlined_call_operand.vmem [shape: f32[32,1], index: 4, kind: input, shape index: {}]
  %s5 = inlined_call_operand.vmem [shape: bf16[16,32], index: 5, kind: input, shape index: {}]
  %s6 = inlined_call_operand.vmem [shape: f32[16,1], index: 6, kind: input, shape index: {}]
  %s7 = inlined_call_operand.vmem [shape: bf16[8,16], index: 7, kind: input, shape index: {}]
  %s8 = inlined_call_operand.vmem [shape: f32[8,1], index: 8, kind: input, shape index: {}]
  %s9 = inlined_call_operand.vmem [shape: bf16[8,8], index: 9, kind: input, shape index: {}]
  %s10 = inlined_call_operand.vmem [shape: f32[8,1], index: 10, kind: input, shape index: {}]
  %s11 = inlined_call_operand.hbm [shape: f32[8,128], index: 11, kind: output, shape index: {}]
  %s12 = sld [smem:[#allocation0]]
  $region54: #{tpu_custom_call.1} parent=0
    _
  %s14 = ssub.s32 1, %s12
  %s15 = scalar_select 0, %s14, %s12
  $region1: #{tpu_custom_call.1} parent=0
    #allocation2 [shape = 'u8[4096]{0}', space=vmem, size = 0x1000, scoped, tag = 'output window, operand 0, single buffered']
    #allocation3 [shape = 's32[1]{0}', space=sflag, size = 0x4, scoped, tag = 'scoped memory for tpu_custom_call.1']
    %16 = vsyncpa [#allocation3], 0
    // Predicated region
    $region2: #{tpu_custom_call.1} parent=1 // pred_check
      _
    $region3: #{tpu_custom_call.1} parent=1 // pred_check_branch
      %18 = sbr.rel (0) target = $region5
    $region4: #{tpu_custom_call.1} parent=1 // pred_region
      _
    $region5: #{tpu_custom_call.1} parent=1 // pred_fallthru
      _
    // Predicated region
    $region6: #{tpu_custom_call.1} parent=1 // pred_check
      _
    $region7: #{tpu_custom_call.1} parent=1 // pred_check_branch
      %20 = sbr.rel (0) target = $region9
    $region8: #{tpu_custom_call.1} parent=1 // pred_region
      _
    $region9: #{tpu_custom_call.1} parent=1 // pred_fallthru
      _
    // Predicated region
    $region10: #{tpu_custom_call.1} parent=1 // pred_check
      _
    $region11: #{tpu_custom_call.1} parent=1 // pred_check_branch
      %22 = sbr.rel (0) target = $region13
    $region12: #{tpu_custom_call.1} parent=1 // pred_region
      _
    $region13: #{tpu_custom_call.1} parent=1 // pred_fallthru
      _
    // Predicated region
    $region14: #{tpu_custom_call.1} parent=1 // pred_check
      _
    $region15: #{tpu_custom_call.1} parent=1 // pred_check_branch
      %24 = sbr.rel (0) target = $region17
    $region16: #{tpu_custom_call.1} parent=1 // pred_region
      _
    $region17: #{tpu_custom_call.1} parent=1 // pred_fallthru
      _
    // Predicated region
    $region18: #{tpu_custom_call.1} parent=1 // pred_check
      _
    $region19: #{tpu_custom_call.1} parent=1 // pred_check_branch
      %26 = sbr.rel (0) target = $region21
    $region20: #{tpu_custom_call.1} parent=1 // pred_region
      _
    $region21: #{tpu_custom_call.1} parent=1 // pred_fallthru
      _
    // Predicated region
    $region22: #{tpu_custom_call.1} parent=1 // pred_check
      _
    $region23: #{tpu_custom_call.1} parent=1 // pred_check_branch
      %28 = sbr.rel (0) target = $region25
    $region24: #{tpu_custom_call.1} parent=1 // pred_region
      _
    $region25: #{tpu_custom_call.1} parent=1 // pred_fallthru
      _
    // Predicated region
    $region26: #{tpu_custom_call.1} parent=1 // pred_check
      _
    $region27: #{tpu_custom_call.1} parent=1 // pred_check_branch
      %30 = sbr.rel (0) target = $region29
    $region28: #{tpu_custom_call.1} parent=1 // pred_region
      _
    $region29: #{tpu_custom_call.1} parent=1 // pred_fallthru
      _
    // Predicated region
    $region30: #{tpu_custom_call.1} parent=1 // pred_check
      _
    $region31: #{tpu_custom_call.1} parent=1 // pred_check_branch
      %32 = sbr.rel (0) target = $region33
    $region32: #{tpu_custom_call.1} parent=1 // pred_region
      _
    $region33: #{tpu_custom_call.1} parent=1 // pred_fallthru
      _
    // Predicated region
    $region34: #{tpu_custom_call.1} parent=1 // pred_check
      _
    $region35: #{tpu_custom_call.1} parent=1 // pred_check_branch
      %34 = sbr.rel (0) target = $region37
    $region36: #{tpu_custom_call.1} parent=1 // pred_region
      _
    $region37: #{tpu_custom_call.1} parent=1 // pred_fallthru
      _
    // Predicated region
    $region38: #{tpu_custom_call.1} parent=1 // pred_check
      _
    $region39: #{tpu_custom_call.1} parent=1 // pred_check_branch
      %36 = sbr.rel (0) target = $region41
    $region40: #{tpu_custom_call.1} parent=1 // pred_region
      _
    $region41: #{tpu_custom_call.1} parent=1 // pred_fallthru
      _
    // Predicated region
    $region42: #{tpu_custom_call.1} parent=1 // pred_check
      _
    $region43: #{tpu_custom_call.1} parent=1 // pred_check_branch
      %38 = sbr.rel (0) target = $region45
    $region44: #{tpu_custom_call.1} parent=1 // pred_region
      _
    $region45: #{tpu_custom_call.1} parent=1 // pred_fallthru
      _
    %v40 = vld [vmem:[%s1] sm:$0xf]
    %v41 = vld [vmem:[%s1 + $0x4] sm:$0xf]
    %v42 = vld [vmem:[%s1 + $0x8] sm:$0xf]
    %v43 = vld [vmem:[%s1 + $0xc] sm:$0xf]
    %v44 = vld [vmem:[%s1 + $0x10] sm:$0xf]
    %v45 = vld [vmem:[%s1 + $0x14] sm:$0xf]
    %v46 = vld [vmem:[%s1 + $0x18] sm:$0xf]
    %v47 = vld [vmem:[%s1 + $0x1c] sm:$0xf]
    %v48 = vld [vmem:[%s2] sm:$0xff]
    %v49 = vld [vmem:[%s2 + $0x8] sm:$0xff]
    %v50 = vld [vmem:[%s2 + $0x10] sm:$0xff]
    %v51 = vld [vmem:[%s2 + $0x18] sm:$0xff]
    %v52 = vld [vmem:[%s2 + $0x20] sm:$0xff]
    %v53 = vld [vmem:[%s2 + $0x28] sm:$0xff]
    %v54 = vld [vmem:[%s2 + $0x30] sm:$0xff]
    %v55 = vld [vmem:[%s2 + $0x38] sm:$0xff]
    %v56 = vld [vmem:[%s3] sm:$0xf]
    %v57 = vld [vmem:[%s3 + $0x4] sm:$0xf]
    %v58 = vld [vmem:[%s3 + $0x8] sm:$0xf]
    %v59 = vld [vmem:[%s3 + $0xc] sm:$0xf]
    %v60 = vld [vmem:[%s4] sm:$0xff]
    %v61 = vld [vmem:[%s4 + $0x8] sm:$0xff]
    %v62 = vld [vmem:[%s4 + $0x10] sm:$0xff]
    %v63 = vld [vmem:[%s4 + $0x18] sm:$0xff]
    %v64 = vld [vmem:[%s5] sm:$0xf]
    %v65 = vld [vmem:[%s5 + $0x4] sm:$0xf]
    %v66 = vld [vmem:[%s6] sm:$0xff]
    %v67 = vld [vmem:[%s6 + $0x8] sm:$0xff]
    %v68 = vld [vmem:[%s7] sm:$0xf]
    %v69 = vld [vmem:[%s8] sm:$0xff]
    %v70 = vld [vmem:[%s9] sm:$0xf]
    %v71 = vld [vmem:[%s10] sm:$0xff]
    %v72 = vld [vmem:[%s0] sm:$0xff]
    %v73 = vld [vmem:[%s0 + $0x8] sm:$0xff]
    %v74 = vld [vmem:[%s0 + $0x10] sm:$0xff]
    %v75 = vld [vmem:[%s0 + $0x18] sm:$0xff]
    %v76 = vld [vmem:[%s0 + $0x20] sm:$0xff]
    %v77 = vld [vmem:[%s0 + $0x28] sm:$0xff]
    %v78 = vld [vmem:[%s0 + $0x30] sm:$0xff]
    %v79 = vld [vmem:[%s0 + $0x38] sm:$0xff]
    %v80 = vld [vmem:[%s0 + $0x40] sm:$0xff]
    %v81 = vld [vmem:[%s0 + $0x48] sm:$0xff]
    %v82 = vld [vmem:[%s0 + $0x50] sm:$0xff]
    %v83 = vld [vmem:[%s0 + $0x58] sm:$0xff]
    %v84 = vld [vmem:[%s0 + $0x60] sm:$0xff]
    %v85 = vld [vmem:[%s0 + $0x68] sm:$0xff]
    %v86 = vld [vmem:[%s0 + $0x70] sm:$0xff]
    %v87 = vld [vmem:[%s0 + $0x78] sm:$0xff]
    %v88 = vpack.c.bf16 %v73, %v72
    %v89 = vpack.c.bf16 %v75, %v74
    %v90 = vpack.c.bf16 %v77, %v76
    %v91 = vpack.c.bf16 %v79, %v78
    %v92 = vpack.c.bf16 %v81, %v80
    %v93 = vpack.c.bf16 %v83, %v82
    %v94 = vpack.c.bf16 %v85, %v84
    %v95 = vpack.c.bf16 %v87, %v86
    %97 = vset.pattern.permute.xlu0 0
    %98 = vperm.xlu0 %97, %v48
    %v99 = vpop.permute.xlu0 %98
    %102 = vset.pattern.permute.xlu0 0
    %103 = vperm.xlu0 %102, %v49
    %v104 = vpop.permute.xlu0 %103
    %107 = vset.pattern.permute.xlu0 0
    %108 = vperm.xlu0 %107, %v50
    %v109 = vpop.permute.xlu0 %108
    %112 = vset.pattern.permute.xlu0 0
    %113 = vperm.xlu0 %112, %v51
    %v114 = vpop.permute.xlu0 %113
    %117 = vset.pattern.permute.xlu0 0
    %118 = vperm.xlu0 %117, %v52
    %v119 = vpop.permute.xlu0 %118
    %122 = vset.pattern.permute.xlu0 0
    %123 = vperm.xlu0 %122, %v53
    %v124 = vpop.permute.xlu0 %123
    %127 = vset.pattern.permute.xlu0 0
    %128 = vperm.xlu0 %127, %v54
    %v129 = vpop.permute.xlu0 %128
    %132 = vset.pattern.permute.xlu0 0
    %133 = vperm.xlu0 %132, %v55
    %v134 = vpop.permute.xlu0 %133
    %v144 = vunpack.c.l.b16 %v40
    %v145 = vunpack.c.l.b16 %v41
    %v146 = vunpack.c.l.b16 %v42
    %v147 = vunpack.c.l.b16 %v43
    %v148 = vunpack.c.l.b16 %v44
    %v149 = vunpack.c.l.b16 %v45
    %v150 = vunpack.c.l.b16 %v46
    %v151 = vunpack.c.l.b16 %v47
    %v152 = vpack.c.b16 %v145, %v144
    %v153 = vpack.c.b16 %v147, %v146
    %v154 = vpack.c.b16 %v149, %v148
    %v155 = vpack.c.b16 %v151, %v150
    %vm156 = vcmask 64512
    %v158 = vsel %vm156, %v152, 0
    %v161 = vsel %vm156, %v153, 0
    %v164 = vsel %vm156, %v154, 0
    %v167 = vsel %vm156, %v155, 0
    %v170 = vsel %vm156, %v88, 0
    %v173 = vsel %vm156, %v89, 0
    %v176 = vsel %vm156, %v90, 0
    %v179 = vsel %vm156, %v91, 0
    %v182 = vsel %vm156, %v92, 0
    %v185 = vsel %vm156, %v93, 0
    %v188 = vsel %vm156, %v94, 0
    %v191 = vsel %vm156, %v95, 0
    %193 = vmatprep.subr.bf16.mxu0 0
    %194 = vmatpush1.bf16.xpose.msra.mxu0 %v170
    %195 = vmatprep.subr.bf16.mxu0 0
    %196 = vmatpush1.bf16.xpose.msra.mxu0 %v173
    %197 = vmatprep.subr.bf16.mxu0 0
    %198 = vmatpush1.bf16.xpose.msra.mxu0 %v176
    %199 = vmatprep.subr.bf16.mxu0 0
    %200 = vmatpush1.bf16.xpose.msra.mxu0 %v179
    %201 = vmatprep.subr.bf16.mxu0 0
    %202 = vmatpush1.bf16.xpose.msra.mxu0 %v182
    %203 = vmatprep.subr.bf16.mxu0 0
    %204 = vmatpush1.bf16.xpose.msra.mxu0 %v185
    %205 = vmatprep.subr.bf16.mxu0 0
    %206 = vmatpush1.bf16.xpose.msra.mxu0 %v188
    %207 = vmatprep.subr.bf16.mxu0 0
    %208 = vmatpush1.bf16.xpose.msra.mxu0 %v191
    %209 = vmatprep.subr.bf16.mxu0 0
    %210 = vmatpush1.bf16.xpose.msra.mxu0 0
    %211 = vmatprep.subr.bf16.mxu0 0
    %212 = vmatpush1.bf16.xpose.msra.mxu0 0
    %213 = vmatprep.subr.bf16.mxu0 0
    %214 = vmatpush1.bf16.xpose.msra.mxu0 0
    %215 = vmatprep.subr.bf16.mxu0 0
    %216 = vmatpush1.bf16.xpose.msra.mxu0 0
    %217 = vmatprep.subr.bf16.mxu0 0
    %218 = vmatpush1.bf16.xpose.msra.mxu0 0
    %219 = vmatprep.subr.bf16.mxu0 0
    %220 = vmatpush1.bf16.xpose.msra.mxu0 0
    %221 = vmatprep.subr.bf16.mxu0 0
    %222 = vmatpush1.bf16.xpose.msra.mxu0 0
    %223 = vmatprep.subr.bf16.mxu0 0
    %224 = vmatpush1.bf16.xpose.msra.mxu0 0
    %225 = vmatprep.mubr.bf16.mxu0 0
    %226 = vmatmul.mubr.bf16.gmra.mrb[0].mxu0 %v158
    %v227 = vpop.f32.mrb[0].mxu0
    %v228 = vadd.f32 %v99, %v227
    %v229 = vpop.f32.mrb[0].mxu0
    %v230 = vpop.f32.mrb[0].mxu0
    %v231 = vadd.f32 %v104, %v230
    %v232 = vpop.f32.mrb[0].mxu0
    %233 = vmatprep.mubr.bf16.mxu0 0
    %234 = vmatmul.mubr.bf16.gmra.mrb[0].mxu0 %v161
    %v235 = vpop.f32.mrb[0].mxu0
    %v236 = vadd.f32 %v109, %v235
    %v237 = vpop.f32.mrb[0].mxu0
    %v238 = vpop.f32.mrb[0].mxu0
    %v239 = vadd.f32 %v114, %v238
    %v240 = vpop.f32.mrb[0].mxu0
    %241 = vmatprep.mubr.bf16.mxu0 0
    %242 = vmatmul.mubr.bf16.gmra.mrb[0].mxu0 %v164
    %v243 = vpop.f32.mrb[0].mxu0
    %v244 = vadd.f32 %v119, %v243
    %v245 = vpop.f32.mrb[0].mxu0
    %v246 = vpop.f32.mrb[0].mxu0
    %v247 = vadd.f32 %v124, %v246
    %v248 = vpop.f32.mrb[0].mxu0
    %249 = vmatprep.mubr.bf16.mxu0 0
    %250 = vmatmul.mubr.bf16.gmra.mrb[0].mxu0 %v167
    %v251 = vpop.f32.mrb[0].mxu0
    %v252 = vadd.f32 %v129, %v251
    %v253 = vpop.f32.mrb[0].mxu0
    %v254 = vpop.f32.mrb[0].mxu0
    %v255 = vadd.f32 %v134, %v254
    %v256 = vpop.f32.mrb[0].mxu0
    %257 = vdwg.mxu0
    %v258 = vmax.f32 %v228, 0.0
    %v259 = vmax.f32 %v231, 0.0
    %v260 = vmax.f32 %v236, 0.0
    %v261 = vmax.f32 %v239, 0.0
    %v262 = vmax.f32 %v244, 0.0
    %v263 = vmax.f32 %v247, 0.0
    %v264 = vmax.f32 %v252, 0.0
    %v265 = vmax.f32 %v255, 0.0
    %v266 = vpack.c.bf16 %v259, %v258
    %v267 = vpack.c.bf16 %v261, %v260
    %v268 = vpack.c.bf16 %v263, %v262
    %v269 = vpack.c.bf16 %v265, %v264
    %271 = vset.pattern.permute.xlu0 0
    %272 = vperm.xlu0 %271, %v60
    %v273 = vpop.permute.xlu0 %272
    %276 = vset.pattern.permute.xlu0 0
    %277 = vperm.xlu0 %276, %v61
    %v278 = vpop.permute.xlu0 %277
    %281 = vset.pattern.permute.xlu0 0
    %282 = vperm.xlu0 %281, %v62
    %v283 = vpop.permute.xlu0 %282
    %286 = vset.pattern.permute.xlu0 0
    %287 = vperm.xlu0 %286, %v63
    %v288 = vpop.permute.xlu0 %287
    %v294 = vunpack.c.l.b16 %v56
    %v295 = vunpack.c.l.b16 %v57
    %v296 = vunpack.c.l.b16 %v58
    %v297 = vunpack.c.l.b16 %v59
    %v298 = vpack.c.b16 %v295, %v294
    %v299 = vpack.c.b16 %v297, %v296
    %vm300 = vcmask 523264
    %v302 = vsel %vm300, %v298, 0
    %v305 = vsel %vm300, %v299, 0
    %307 = vmatprep.subr.bf16.mxu0 0
    %308 = vmatpush1.bf16.msra.mxu0 %v266
    %309 = vmatprep.subr.bf16.mxu0 0
    %310 = vmatpush1.bf16.msra.mxu0 %v267
    %311 = vmatprep.subr.bf16.mxu0 0
    %312 = vmatpush1.bf16.msra.mxu0 %v268
    %313 = vmatprep.subr.bf16.mxu0 0
    %314 = vmatpush1.bf16.msra.mxu0 %v269
    %315 = vmatprep.subr.bf16.mxu0 0
    %316 = vmatpush1.bf16.msra.mxu0 0
    %317 = vmatprep.subr.bf16.mxu0 0
    %318 = vmatpush1.bf16.msra.mxu0 0
    %319 = vmatprep.subr.bf16.mxu0 0
    %320 = vmatpush1.bf16.msra.mxu0 0
    %321 = vmatprep.subr.bf16.mxu0 0
    %322 = vmatpush1.bf16.msra.mxu0 0
    %323 = vmatprep.subr.bf16.mxu0 0
    %324 = vmatpush1.bf16.msra.mxu0 0
    %325 = vmatprep.subr.bf16.mxu0 0
    %326 = vmatpush1.bf16.msra.mxu0 0
    %327 = vmatprep.subr.bf16.mxu0 0
    %328 = vmatpush1.bf16.msra.mxu0 0
    %329 = vmatprep.subr.bf16.mxu0 0
    %330 = vmatpush1.bf16.msra.mxu0 0
    %331 = vmatprep.subr.bf16.mxu0 0
    %332 = vmatpush1.bf16.msra.mxu0 0
    %333 = vmatprep.subr.bf16.mxu0 0
    %334 = vmatpush1.bf16.msra.mxu0 0
    %335 = vmatprep.subr.bf16.mxu0 0
    %336 = vmatpush1.bf16.msra.mxu0 0
    %337 = vmatprep.subr.bf16.mxu0 0
    %338 = vmatpush1.bf16.msra.mxu0 0
    %339 = vmatprep.mubr.bf16.mxu0 0
    %340 = vmatmul.mubr.bf16.gmra.mrb[0].mxu0 %v302
    %v341 = vpop.f32.mrb[0].mxu0
    %v342 = vadd.f32 %v273, %v341
    %v343 = vpop.f32.mrb[0].mxu0
    %v344 = vpop.f32.mrb[0].mxu0
    %v345 = vadd.f32 %v278, %v344
    %v346 = vpop.f32.mrb[0].mxu0
    %347 = vmatprep.mubr.bf16.mxu0 0
    %348 = vmatmul.mubr.bf16.gmra.mrb[0].mxu0 %v305
    %v349 = vpop.f32.mrb[0].mxu0
    %v350 = vadd.f32 %v283, %v349
    %v351 = vpop.f32.mrb[0].mxu0
    %v352 = vpop.f32.mrb[0].mxu0
    %v353 = vadd.f32 %v288, %v352
    %v354 = vpop.f32.mrb[0].mxu0
    %355 = vdwg.mxu0
    %v356 = vmax.f32 %v342, 0.0
    %v357 = vmax.f32 %v345, 0.0
    %v358 = vmax.f32 %v350, 0.0
    %v359 = vmax.f32 %v353, 0.0
    %v360 = vpack.c.bf16 %v357, %v356
    %v361 = vpack.c.bf16 %v359, %v358
    %363 = vset.pattern.permute.xlu0 0
    %364 = vperm.xlu0 %363, %v66
    %v365 = vpop.permute.xlu0 %364
    %368 = vset.pattern.permute.xlu0 0
    %369 = vperm.xlu0 %368, %v67
    %v370 = vpop.permute.xlu0 %369
    %v374 = vunpack.c.l.b16 %v64
    %v375 = vunpack.c.l.b16 %v65
    %v376 = vpack.c.b16 %v375, %v374
    %vm377 = vcmask 261120
    %v379 = vsel %vm377, %v376, 0
    %381 = vmatprep.subr.bf16.mxu0 0
    %382 = vmatpush1.bf16.msra.mxu0 %v360
    %383 = vmatprep.subr.bf16.mxu0 0
    %384 = vmatpush1.bf16.msra.mxu0 %v361
    %385 = vmatprep.subr.bf16.mxu0 0
    %386 = vmatpush1.bf16.msra.mxu0 0
    %387 = vmatprep.subr.bf16.mxu0 0
    %388 = vmatpush1.bf16.msra.mxu0 0
    %389 = vmatprep.subr.bf16.mxu0 0
    %390 = vmatpush1.bf16.msra.mxu0 0
    %391 = vmatprep.subr.bf16.mxu0 0
    %392 = vmatpush1.bf16.msra.mxu0 0
    %393 = vmatprep.subr.bf16.mxu0 0
    %394 = vmatpush1.bf16.msra.mxu0 0
    %395 = vmatprep.subr.bf16.mxu0 0
    %396 = vmatpush1.bf16.msra.mxu0 0
    %397 = vmatprep.subr.bf16.mxu0 0
    %398 = vmatpush1.bf16.msra.mxu0 0
    %399 = vmatprep.subr.bf16.mxu0 0
    %400 = vmatpush1.bf16.msra.mxu0 0
    %401 = vmatprep.subr.bf16.mxu0 0
    %402 = vmatpush1.bf16.msra.mxu0 0
    %403 = vmatprep.subr.bf16.mxu0 0
    %404 = vmatpush1.bf16.msra.mxu0 0
    %405 = vmatprep.subr.bf16.mxu0 0
    %406 = vmatpush1.bf16.msra.mxu0 0
    %407 = vmatprep.subr.bf16.mxu0 0
    %408 = vmatpush1.bf16.msra.mxu0 0
    %409 = vmatprep.subr.bf16.mxu0 0
    %410 = vmatpush1.bf16.msra.mxu0 0
    %411 = vmatprep.subr.bf16.mxu0 0
    %412 = vmatpush1.bf16.msra.mxu0 0
    %413 = vmatprep.mubr.bf16.mxu0 0
    %414 = vmatmul.mubr.bf16.gmra.mrb[0].mxu0 %v379
    %v415 = vpop.f32.mrb[0].mxu0
    %v416 = vadd.f32 %v365, %v415
    %v417 = vpop.f32.mrb[0].mxu0
    %v418 = vpop.f32.mrb[0].mxu0
    %v419 = vadd.f32 %v370, %v418
    %v420 = vpop.f32.mrb[0].mxu0
    %421 = vdwg.mxu0
    %v422 = vmax.f32 %v416, 0.0
    %v423 = vmax.f32 %v419, 0.0
    %v424 = vpack.c.bf16 %v423, %v422
    %426 = vset.pattern.permute.xlu0 0
    %427 = vperm.xlu0 %426, %v69
    %v428 = vpop.permute.xlu0 %427
    %vm430 = vcmask 130048
    %v432 = vsel %vm430, %v68, 0
    %434 = vmatprep.subr.bf16.mxu0 0
    %435 = vmatpush1.bf16.msra.mxu0 %v424
    %436 = vmatprep.subr.bf16.mxu0 0
    %437 = vmatpush1.bf16.msra.mxu0 0
    %438 = vmatprep.subr.bf16.mxu0 0
    %439 = vmatpush1.bf16.msra.mxu0 0
    %440 = vmatprep.subr.bf16.mxu0 0
    %441 = vmatpush1.bf16.msra.mxu0 0
    %442 = vmatprep.subr.bf16.mxu0 0
    %443 = vmatpush1.bf16.msra.mxu0 0
    %444 = vmatprep.subr.bf16.mxu0 0
    %445 = vmatpush1.bf16.msra.mxu0 0
    %446 = vmatprep.subr.bf16.mxu0 0
    %447 = vmatpush1.bf16.msra.mxu0 0
    %448 = vmatprep.subr.bf16.mxu0 0
    %449 = vmatpush1.bf16.msra.mxu0 0
    %450 = vmatprep.subr.bf16.mxu0 0
    %451 = vmatpush1.bf16.msra.mxu0 0
    %452 = vmatprep.subr.bf16.mxu0 0
    %453 = vmatpush1.bf16.msra.mxu0 0
    %454 = vmatprep.subr.bf16.mxu0 0
    %455 = vmatpush1.bf16.msra.mxu0 0
    %456 = vmatprep.subr.bf16.mxu0 0
    %457 = vmatpush1.bf16.msra.mxu0 0
    %458 = vmatprep.subr.bf16.mxu0 0
    %459 = vmatpush1.bf16.msra.mxu0 0
    %460 = vmatprep.subr.bf16.mxu0 0
    %461 = vmatpush1.bf16.msra.mxu0 0
    %462 = vmatprep.subr.bf16.mxu0 0
    %463 = vmatpush1.bf16.msra.mxu0 0
    %464 = vmatprep.subr.bf16.mxu0 0
    %465 = vmatpush1.bf16.msra.mxu0 0
    %466 = vmatprep.mubr.bf16.mxu0 0
    %467 = vmatmul.mubr.bf16.gmra.mrb[0].mxu0 %v432
    %v468 = vpop.f32.mrb[0].mxu0
    %v469 = vadd.f32 %v428, %v468
    %v470 = vpop.f32.mrb[0].mxu0
    %v471 = vpop.f32.mrb[0].mxu0
    %v472 = vpop.f32.mrb[0].mxu0
    %473 = vdwg.mxu0
    %v474 = vmax.f32 %v469, 0.0
    %v475 = vpack.c.bf16 %v474, %v474
    %477 = vset.pattern.permute.xlu0 0
    %478 = vperm.xlu0 %477, %v71
    %v479 = vpop.permute.xlu0 %478
    %v482 = vsel %vm156, %v70, 0
    %vm484 = vcmask 1043456
    %v486 = vsel %vm484, %v475, 0
    %488 = vmatprep.subr.bf16.mxu0 0
    %489 = vmatpush1.bf16.msra.mxu0 %v486
    %490 = vmatprep.subr.bf16.mxu0 0
    %491 = vmatpush1.bf16.msra.mxu0 0
    %492 = vmatprep.subr.bf16.mxu0 0
    %493 = vmatpush1.bf16.msra.mxu0 0
    %494 = vmatprep.subr.bf16.mxu0 0
    %495 = vmatpush1.bf16.msra.mxu0 0
    %496 = vmatprep.subr.bf16.mxu0 0
    %497 = vmatpush1.bf16.msra.mxu0 0
    %498 = vmatprep.subr.bf16.mxu0 0
    %499 = vmatpush1.bf16.msra.mxu0 0
    %500 = vmatprep.subr.bf16.mxu0 0
    %501 = vmatpush1.bf16.msra.mxu0 0
    %502 = vmatprep.subr.bf16.mxu0 0
    %503 = vmatpush1.bf16.msra.mxu0 0
    %504 = vmatprep.subr.bf16.mxu0 0
    %505 = vmatpush1.bf16.msra.mxu0 0
    %506 = vmatprep.subr.bf16.mxu0 0
    %507 = vmatpush1.bf16.msra.mxu0 0
    %508 = vmatprep.subr.bf16.mxu0 0
    %509 = vmatpush1.bf16.msra.mxu0 0
    %510 = vmatprep.subr.bf16.mxu0 0
    %511 = vmatpush1.bf16.msra.mxu0 0
    %512 = vmatprep.subr.bf16.mxu0 0
    %513 = vmatpush1.bf16.msra.mxu0 0
    %514 = vmatprep.subr.bf16.mxu0 0
    %515 = vmatpush1.bf16.msra.mxu0 0
    %516 = vmatprep.subr.bf16.mxu0 0
    %517 = vmatpush1.bf16.msra.mxu0 0
    %518 = vmatprep.subr.bf16.mxu0 0
    %519 = vmatpush1.bf16.msra.mxu0 0
    %520 = vmatprep.mubr.bf16.mxu0 0
    %521 = vmatmul.mubr.bf16.gmra.mrb[0].mxu0 %v482
    %v522 = vpop.f32.mrb[0].mxu0
    %v523 = vadd.f32 %v479, %v522
    %v524 = vpop.f32.mrb[0].mxu0
    %v525 = vpop.f32.mrb[0].mxu0
    %v526 = vpop.f32.mrb[0].mxu0
    %527 = vdwg.mxu0
    %528 = vst [vmem:[#allocation2] sm:$0xff] %v523
    // Predicated region
    $region46: #{tpu_custom_call.1} parent=1 // pred_check
      _
    $region47: #{tpu_custom_call.1} parent=1 // pred_check_branch
      %530 = sbr.rel (0) target = $region49
    $region48: #{tpu_custom_call.1} parent=1 // pred_region
      %s532 = ssub.s32 128, 128
      %533 = vsyncadd [#allocation3], %s532
      %s535 = sshll.u32 [#allocation2], 4
      %s536 = int_to_ptr.vmem [resolvable:$true] %s535
      %538 = dma.vmem_to_hbm [thread:$0]  %s536, 128, %s11, [#allocation3]
    $region49: #{tpu_custom_call.1} parent=1 // pred_fallthru
      _
    // Predicated region
    $region50: #{tpu_custom_call.1} parent=1 // pred_check
      _
    $region51: #{tpu_custom_call.1} parent=1 // pred_check_branch
      %540 = sbr.rel (0) target = $region53
    $region52: #{tpu_custom_call.1} parent=1 // pred_region
      %541 = dma.done [#allocation3], 128
    $region53: #{tpu_custom_call.1} parent=1 // pred_fallthru
      _
    %542 = vsyncpa [#allocation3], 1

</llo_original>
